<compile_context>
chip_gen: v7x
topology: tpu7x:2x2x1
jax: 0.10.0
libtpu: 0.0.40
codegen_flags: <defaults>
</compile_context>

<pallas_src>
import functools

import jax
import jax.numpy as jnp
from jax import lax
from jax.experimental import pallas as pl
from jax.experimental.pallas import tpu as pltpu


def _tv_kernel(x_ref, out_ref, *, num_planes, block_planes, mask_planes):
    # x_ref: (TB, H, W) tile of (batch*channel) planes in VMEM.
    x = x_ref[...].astype(jnp.float32)
    tb, h, w = x.shape

    if mask_planes:
        # Ragged last block: planes past num_planes hold undefined data.
        # Use a select (not a multiply) so NaN/Inf garbage cannot leak in.
        i = pl.program_id(0)
        plane_ids = lax.broadcasted_iota(jnp.int32, (tb, h, w), 0)
        x = jnp.where(plane_ids < (num_planes - i * block_planes), x, 0.0)

    # Shifted copies with the last row / column duplicated, so the wrapped
    # positions difference to exactly zero.  Both partials are then full
    # width-W vectors: one merged lane-dense output block, no (W-1)-wide
    # masked stores and no extra boundary masks.
    # TODO(synk): if a v7x bundle dump shows these shifted slices lowering to
    # extra VMEM copy passes, restructure as pltpu.roll (XLU slot) + mask.
    x_dn = jnp.concatenate([x[:, 1:, :], x[:, -1:, :]], axis=1)   # row r -> row r+1
    x_rt = jnp.concatenate([x[:, :, 1:], x[:, :, -1:]], axis=2)   # col c -> col c+1
    dh = x_dn - x
    dw = x_rt - x

    # Reduce over plane & height axes only; keep the lane axis.  The final
    # cross-lane reduction happens once, in the wrapper (tree sum).
    h_part = jnp.sum(dh * dh, axis=(0, 1), keepdims=True)         # (1, 1, W)
    w_part = jnp.sum(dw * dw, axis=(0, 1), keepdims=True)         # (1, 1, W)
    out_ref[...] = jnp.concatenate([h_part, w_part], axis=1)      # (1, 2, W)


def tv_loss(x, tv_loss_weight=1.0):
    """Total variation loss matching PyTorch TVLoss.forward.

    x: (B, C, H, W) array (NCHW).  Returns a float32 scalar.
    """
    b, c, h, w = x.shape
    p = b * c
    x_flat = x.reshape(p, h, w)

    # ---- honest VMEM accounting: layout padding + f32 temporaries ----
    itemsize = jnp.dtype(x.dtype).itemsize
    sublane = {4: 8, 2: 16, 1: 32}.get(itemsize, 8)
    h_pad = -(-h // sublane) * sublane
    w_pad = -(-w // 128) * 128
    plane_in_bytes = h_pad * w_pad * itemsize      # padded input plane in VMEM
    plane_f32_bytes = h_pad * w_pad * 4            # one f32-sized temporary

    # Per-generation budget: 128 MiB parts (v5e/v6e) -> 64 MiB, 64 MiB (v7x) -> ~44 MiB.
    try:
        vmem_cap = int(pltpu.get_tpu_info().vmem_capacity_bytes)
    except Exception:
        vmem_cap = 64 * 1024 * 1024                # conservative fallback
    vmem_budget = min(64 * 1024 * 1024, (vmem_cap * 11) // 16)

    # 2x double-buffered input tile + ~4 f32-sized temporaries (cast copy,
    # shifted copies, diffs/squares) + reserve for outputs/internal scratch.
    reserve = 2 * 1024 * 1024
    per_plane = 2 * plane_in_bytes + 4 * plane_f32_bytes
    tb_budget = max(1, (vmem_budget - reserve) // per_plane)
    tb_cap = max(1, (16 * 1024 * 1024) // plane_in_bytes)  # >16 MiB tiles stop helping
    tb = int(max(1, min(p, tb_budget, tb_cap)))

    # Prefer a TB that divides P exactly (statically removes the in-kernel
    # plane mask and the wasted ragged-block work) when one exists nearby.
    if p % tb != 0:
        for cand in range(tb, 0, -1):
            if p % cand == 0:
                if 2 * cand >= tb:
                    tb = cand
                break
    mask_planes = (p % tb) != 0
    g = pl.cdiv(p, tb)

    # TODO(synk): H-tile with a 1-row halo once a single padded plane exceeds
    # the budget (per_plane > vmem_budget); until then just request more VMEM.
    vmem_limit = int(min(max(vmem_budget, per_plane + reserve), vmem_cap))

    # TODO(synk): for tiny planes (W < 128) pack floor(128/W) planes along the
    # lane axis and mask cross-plane diffs; as written the kernel is tuned for
    # W >= 128 images (the 16x16 self-test just under-fills the lanes).

    kernel = functools.partial(
        _tv_kernel, num_planes=p, block_planes=tb, mask_planes=mask_planes)

    parts = pl.pallas_call(
        kernel,
        out_shape=jax.ShapeDtypeStruct((g, 2, w), jnp.float32),
        grid_spec=pltpu.PrefetchScalarGridSpec(
            num_scalar_prefetch=0,
            grid=(g,),
            in_specs=[pl.BlockSpec((tb, h, w), lambda i: (i, 0, 0))],
            out_specs=pl.BlockSpec((1, 2, w), lambda i: (i, 0, 0)),
        ),
        compiler_params=pltpu.CompilerParams(
            # Disjoint per-step output blocks, no revisited accumulator ->
            # the plane axis may shard across v7x's two TensorCores.
            dimension_semantics=("parallel",),
            vmem_limit_bytes=vmem_limit,
        ),
    )(x_flat)

    # Final (tree) reduction of the tiny per-step partials in the wrapper.
    h_tv = jnp.sum(parts[:, 0, :])
    w_tv = jnp.sum(parts[:, 1, :])

    # Same normalization as the PyTorch module (like the original, degenerate
    # h==1 or w==1 inputs divide by zero).
    count_h = c * (h - 1) * w
    count_w = c * h * (w - 1)
    return (
        tv_loss_weight * 2.0 * (h_tv / count_h + w_tv / count_w) / b
    ).astype(jnp.float32)


def tv_loss_ref(x, tv_loss_weight=1.0):
    """Pure-JAX reference for verification."""
    b, c, h, w = x.shape
    xf = x.astype(jnp.float32)
    count_h = c * (h - 1) * w
    count_w = c * h * (w - 1)
    h_tv = jnp.sum((xf[:, :, 1:, :] - xf[:, :, : h - 1, :]) ** 2)
    w_tv = jnp.sum((xf[:, :, :, 1:] - xf[:, :, :, : w - 1]) ** 2)
    return tv_loss_weight * 2.0 * (h_tv / count_h + w_tv / count_w) / b


if __name__ == "__main__":
    key = jax.random.PRNGKey(0)
    x = jax.random.normal(key, (2, 4, 16, 16), dtype=jnp.float32)

    out = jax.block_until_ready(tv_loss(x, tv_loss_weight=1.0))
    ref = jax.block_until_ready(tv_loss_ref(x, tv_loss_weight=1.0))
    assert jnp.allclose(out, ref, rtol=1e-5, atol=1e-5), (out, ref)

    print("KERNEL_OK")
</pallas_src>

<mosaic_0001>
module attributes {stable_mosaic.version = 11 : i64} {
  func.func @_tv_kernel(%arg0: i32, %arg1: memref<8x16x16xf32, #tpu.memory_space<vmem>>, %arg2: memref<1x2x16xf32, #tpu.memory_space<vmem>>) attributes {dimension_semantics = [#tpu.dimension_semantics<parallel>], iteration_bounds = array<i64: 1>, scalar_prefetch = 0 : i64, scratch_operands = 0 : i64, tpu.core_type = #tpu.core_type<tc>, window_params = [{transform_indices = @transform_0, window_bounds = array<i64: 8, 16, 16>}, {transform_indices = @transform_1, window_bounds = array<i64: 1, 2, 16>}]} {
    %c0 = arith.constant 0 : index
    %c0_0 = arith.constant 0 : index
    %c0_1 = arith.constant 0 : index
    %0 = vector.load %arg1[%c0, %c0_0, %c0_1] : memref<8x16x16xf32, #tpu.memory_space<vmem>>, vector<8x16x16xf32>
    %1 = vector.extract_strided_slice %0 {offsets = [0, 1, 0], sizes = [8, 15, 16], strides = [1, 1, 1]} : vector<8x16x16xf32> to vector<8x15x16xf32>
    %2 = vector.extract_strided_slice %0 {offsets = [0, 15, 0], sizes = [8, 1, 16], strides = [1, 1, 1]} : vector<8x16x16xf32> to vector<8x1x16xf32>
    %3 = tpu.concatenate %1, %2 in 1 : vector<8x15x16xf32>, vector<8x1x16xf32> -> vector<8x16x16xf32>
    %4 = vector.extract_strided_slice %0 {offsets = [0, 0, 1], sizes = [8, 16, 15], strides = [1, 1, 1]} : vector<8x16x16xf32> to vector<8x16x15xf32>
    %5 = vector.extract_strided_slice %0 {offsets = [0, 0, 15], sizes = [8, 16, 1], strides = [1, 1, 1]} : vector<8x16x16xf32> to vector<8x16x1xf32>
    %6 = tpu.concatenate %4, %5 in 2 : vector<8x16x15xf32>, vector<8x16x1xf32> -> vector<8x16x16xf32>
    %7 = arith.subf %3, %0 : vector<8x16x16xf32>
    %8 = arith.subf %6, %0 : vector<8x16x16xf32>
    %9 = arith.mulf %7, %7 : vector<8x16x16xf32>
    %cst = arith.constant dense<0.000000e+00> : vector<16xf32>
    %10 = vector.multi_reduction <add>, %9, %cst [0, 1] : vector<8x16x16xf32> to vector<16xf32>
    %11 = vector.shape_cast %10 : vector<16xf32> to vector<1x1x16xf32>
    %12 = arith.mulf %8, %8 : vector<8x16x16xf32>
    %cst_2 = arith.constant dense<0.000000e+00> : vector<16xf32>
    %13 = vector.multi_reduction <add>, %12, %cst_2 [0, 1] : vector<8x16x16xf32> to vector<16xf32>
    %14 = vector.shape_cast %13 : vector<16xf32> to vector<1x1x16xf32>
    %15 = tpu.concatenate %11, %14 in 1 : vector<1x1x16xf32>, vector<1x1x16xf32> -> vector<1x2x16xf32>
    %c0_3 = arith.constant 0 : index
    %c0_4 = arith.constant 0 : index
    %c0_5 = arith.constant 0 : index
    %16 = vector.load %arg2[%c0_3, %c0_4, %c0_5] : memref<1x2x16xf32, #tpu.memory_space<vmem>>, vector<1x2x16xf32>
    tpu.vector_store %arg2[%c0_3, %c0_4, %c0_5], %15 {strides = array<i32>} : memref<1x2x16xf32, #tpu.memory_space<vmem>>, vector<1x2x16xf32>,
    return
  }
  func.func @transform_0(%arg0: i32) -> (i32, i32, i32) {
    %c0_i32 = arith.constant 0 : i32
    %c0_i32_0 = arith.constant 0 : i32
    %c0_i32_1 = arith.constant 0 : i32
    return %arg0, %c0_i32, %c0_i32_0 : i32, i32, i32
  }
  func.func @transform_1(%arg0: i32) -> (i32, i32, i32) {
    %c0_i32 = arith.constant 0 : i32
    %c0_i32_0 = arith.constant 0 : i32
    %c0_i32_1 = arith.constant 0 : i32
    return %arg0, %c0_i32, %c0_i32_0 : i32, i32, i32
  }
}

</mosaic_0001>

<llo_original>
// kernel: tpu_custom_call.1
$region0: #{tpu_custom_call.1}
  #allocation0 [shape = 'u32[]', space=smem, size = 0x4, offset = 0x4, fixed_abs, tag = 'smem constant byte address 0x4 - core index']
  #allocation1 [shape = 'u32[144,128]{1,0:T(1,128)}', space=vmem, size = 0x12000, scoped, tag = 'internal scratch']
  %s0 = inlined_call_operand.hbm [shape: f32[8,16,16], index: 0, kind: input, shape index: {}]
  %s1 = inlined_call_operand.hbm [shape: f32[1,2,16], index: 1, kind: output, shape index: {}]
  %s2 = sld [smem:[#allocation0]]
  $region18: #{tpu_custom_call.1} parent=0
    _
  %s4 = ssub.s32 1, %s2
  %s5 = scalar_select 0, %s4, %s2
  $region1: #{tpu_custom_call.1} parent=0
    #allocation2 [shape = 'u8[65536]{0}', space=vmem, size = 0x10000, scoped, tag = 'input window, operand 0, single buffered']
    #allocation3 [shape = 's32[1]{0}', space=sflag, size = 0x4, scoped, tag = 'scoped memory for tpu_custom_call.1']
    #allocation4 [shape = 's32[1]{0}', space=sflag, size = 0x4, scoped, tag = 'scoped memory for tpu_custom_call.1']
    #allocation5 [shape = 'u8[1024]{0}', space=vmem, size = 0x400, scoped, tag = 'output window, operand 0, single buffered']
    %6 = vsyncpa [#allocation3], 0
    %7 = vsyncpa [#allocation4], 0
    // Predicated region
    $region2: #{tpu_custom_call.1} parent=1 // pred_check
      _
    $region3: #{tpu_custom_call.1} parent=1 // pred_check_branch
      %9 = sbr.rel (0) target = $region5
    $region4: #{tpu_custom_call.1} parent=1 // pred_region
      %s11 = ssub.s32 2048, 2048
      %12 = vsyncadd [#allocation3], %s11
      %s13 = sshll.u32 [#allocation2], 4
      %s14 = int_to_ptr.vmem [resolvable:$true] %s13
      %19 = dma.hbm_to_vmem [thread:$0]  %s0, 2048, %s14, [#allocation3], 128, 128, 8
    $region5: #{tpu_custom_call.1} parent=1 // pred_fallthru
      _
    // Predicated region
    $region6: #{tpu_custom_call.1} parent=1 // pred_check
      _
    $region7: #{tpu_custom_call.1} parent=1 // pred_check_branch
      %21 = sbr.rel (0) target = $region9
    $region8: #{tpu_custom_call.1} parent=1 // pred_region
      %22 = dma.done [#allocation3], 2048
    $region9: #{tpu_custom_call.1} parent=1 // pred_fallthru
      _
    %v23 = vld [vmem:[#allocation2] sm:$0xff]
    %v24 = vld [vmem:[#allocation2 + $0x8] sm:$0xff]
    %v25 = vld [vmem:[#allocation2 + $0x10] sm:$0xff]
    %v26 = vld [vmem:[#allocation2 + $0x18] sm:$0xff]
    %v27 = vld [vmem:[#allocation2 + $0x20] sm:$0xff]
    %v28 = vld [vmem:[#allocation2 + $0x28] sm:$0xff]
    %v29 = vld [vmem:[#allocation2 + $0x30] sm:$0xff]
    %v30 = vld [vmem:[#allocation2 + $0x38] sm:$0xff]
    %v31 = vld [vmem:[#allocation2 + $0x40] sm:$0xff]
    %v32 = vld [vmem:[#allocation2 + $0x48] sm:$0xff]
    %v33 = vld [vmem:[#allocation2 + $0x50] sm:$0xff]
    %v34 = vld [vmem:[#allocation2 + $0x58] sm:$0xff]
    %v35 = vld [vmem:[#allocation2 + $0x60] sm:$0xff]
    %v36 = vld [vmem:[#allocation2 + $0x68] sm:$0xff]
    %v37 = vld [vmem:[#allocation2 + $0x70] sm:$0xff]
    %v38 = vld [vmem:[#allocation2 + $0x78] sm:$0xff]
    %vm55 = vcmask 1046528
    %v56 = vrot.slane %v23, 1
    %v57 = vrot.slane %v24, 1
    %v58 = vsel %vm55, %v56, %v57
    %v59 = vrot.slane %v25, 1
    %v60 = vrot.slane %v26, 1
    %v61 = vsel %vm55, %v59, %v60
    %v62 = vrot.slane %v27, 1
    %v63 = vrot.slane %v28, 1
    %v64 = vsel %vm55, %v62, %v63
    %v65 = vrot.slane %v29, 1
    %v66 = vrot.slane %v30, 1
    %v67 = vsel %vm55, %v65, %v66
    %v68 = vrot.slane %v31, 1
    %v69 = vrot.slane %v32, 1
    %v70 = vsel %vm55, %v68, %v69
    %v71 = vrot.slane %v33, 1
    %v72 = vrot.slane %v34, 1
    %v73 = vsel %vm55, %v71, %v72
    %v74 = vrot.slane %v35, 1
    %v75 = vrot.slane %v36, 1
    %v76 = vsel %vm55, %v74, %v75
    %v77 = vrot.slane %v37, 1
    %v78 = vrot.slane %v38, 1
    %v79 = vsel %vm55, %v77, %v78
    %v96 = vsel %vm55, %v57, %v24
    %v97 = vsel %vm55, %v60, %v26
    %v98 = vsel %vm55, %v63, %v28
    %v99 = vsel %vm55, %v66, %v30
    %v100 = vsel %vm55, %v69, %v32
    %v101 = vsel %vm55, %v72, %v34
    %v102 = vsel %vm55, %v75, %v36
    %v103 = vsel %vm55, %v78, %v38
    %104 = vrot.lane.b32.xlu0 %v23, 127
    %v105 = vpop.permute.xlu0 %104
    %106 = vrot.lane.b32.xlu0 %v24, 127
    %v107 = vpop.permute.xlu0 %106
    %108 = vrot.lane.b32.xlu0 %v25, 127
    %v109 = vpop.permute.xlu0 %108
    %110 = vrot.lane.b32.xlu0 %v26, 127
    %v111 = vpop.permute.xlu0 %110
    %112 = vrot.lane.b32.xlu0 %v27, 127
    %v113 = vpop.permute.xlu0 %112
    %114 = vrot.lane.b32.xlu0 %v28, 127
    %v115 = vpop.permute.xlu0 %114
    %116 = vrot.lane.b32.xlu0 %v29, 127
    %v117 = vpop.permute.xlu0 %116
    %118 = vrot.lane.b32.xlu0 %v30, 127
    %v119 = vpop.permute.xlu0 %118
    %120 = vrot.lane.b32.xlu0 %v31, 127
    %v121 = vpop.permute.xlu0 %120
    %122 = vrot.lane.b32.xlu0 %v32, 127
    %v123 = vpop.permute.xlu0 %122
    %124 = vrot.lane.b32.xlu0 %v33, 127
    %v125 = vpop.permute.xlu0 %124
    %126 = vrot.lane.b32.xlu0 %v34, 127
    %v127 = vpop.permute.xlu0 %126
    %128 = vrot.lane.b32.xlu0 %v35, 127
    %v129 = vpop.permute.xlu0 %128
    %130 = vrot.lane.b32.xlu0 %v36, 127
    %v131 = vpop.permute.xlu0 %130
    %132 = vrot.lane.b32.xlu0 %v37, 127
    %v133 = vpop.permute.xlu0 %132
    %134 = vrot.lane.b32.xlu0 %v38, 127
    %v135 = vpop.permute.xlu0 %134
    %vm152 = vcmask 121856
    %v153 = vsel %vm152, %v105, %v23
    %v154 = vsel %vm152, %v107, %v24
    %v155 = vsel %vm152, %v109, %v25
    %v156 = vsel %vm152, %v111, %v26
    %v157 = vsel %vm152, %v113, %v27
    %v158 = vsel %vm152, %v115, %v28
    %v159 = vsel %vm152, %v117, %v29
    %v160 = vsel %vm152, %v119, %v30
    %v161 = vsel %vm152, %v121, %v31
    %v162 = vsel %vm152, %v123, %v32
    %v163 = vsel %vm152, %v125, %v33
    %v164 = vsel %vm152, %v127, %v34
    %v165 = vsel %vm152, %v129, %v35
    %v166 = vsel %vm152, %v131, %v36
    %v167 = vsel %vm152, %v133, %v37
    %v168 = vsel %vm152, %v135, %v38
    %v169 = vsub.f32 %v58, %v23
    %v170 = vsub.f32 %v96, %v24
    %v171 = vsub.f32 %v61, %v25
    %v172 = vsub.f32 %v97, %v26
    %v173 = vsub.f32 %v64, %v27
    %v174 = vsub.f32 %v98, %v28
    %v175 = vsub.f32 %v67, %v29
    %v176 = vsub.f32 %v99, %v30
    %v177 = vsub.f32 %v70, %v31
    %v178 = vsub.f32 %v100, %v32
    %v179 = vsub.f32 %v73, %v33
    %v180 = vsub.f32 %v101, %v34
    %v181 = vsub.f32 %v76, %v35
    %v182 = vsub.f32 %v102, %v36
    %v183 = vsub.f32 %v79, %v37
    %v184 = vsub.f32 %v103, %v38
    %v185 = vsub.f32 %v153, %v23
    %v186 = vsub.f32 %v154, %v24
    %v187 = vsub.f32 %v155, %v25
    %v188 = vsub.f32 %v156, %v26
    %v189 = vsub.f32 %v157, %v27
    %v190 = vsub.f32 %v158, %v28
    %v191 = vsub.f32 %v159, %v29
    %v192 = vsub.f32 %v160, %v30
    %v193 = vsub.f32 %v161, %v31
    %v194 = vsub.f32 %v162, %v32
    %v195 = vsub.f32 %v163, %v33
    %v196 = vsub.f32 %v164, %v34
    %v197 = vsub.f32 %v165, %v35
    %v198 = vsub.f32 %v166, %v36
    %v199 = vsub.f32 %v167, %v37
    %v200 = vsub.f32 %v168, %v38
    %v201 = vmul.f32 %v169, %v169
    %v202 = vmul.f32 %v170, %v170
    %v203 = vmul.f32 %v171, %v171
    %v204 = vmul.f32 %v172, %v172
    %v205 = vmul.f32 %v173, %v173
    %v206 = vmul.f32 %v174, %v174
    %v207 = vmul.f32 %v175, %v175
    %v208 = vmul.f32 %v176, %v176
    %v209 = vmul.f32 %v177, %v177
    %v210 = vmul.f32 %v178, %v178
    %v211 = vmul.f32 %v179, %v179
    %v212 = vmul.f32 %v180, %v180
    %v213 = vmul.f32 %v181, %v181
    %v214 = vmul.f32 %v182, %v182
    %v215 = vmul.f32 %v183, %v183
    %v216 = vmul.f32 %v184, %v184
    %vm217 = vcmask 130048
    %v218 = vsel %vm217, %v201, 0.0
    %v219 = vsel %vm217, %v202, 0.0
    %v220 = vadd.f32 %v218, %v219
    %v221 = vsel %vm217, %v203, 0.0
    %v222 = vadd.f32 %v220, %v221
    %v223 = vsel %vm217, %v204, 0.0
    %v224 = vadd.f32 %v222, %v223
    %v225 = vsel %vm217, %v205, 0.0
    %v226 = vadd.f32 %v224, %v225
    %v227 = vsel %vm217, %v206, 0.0
    %v228 = vadd.f32 %v226, %v227
    %v229 = vsel %vm217, %v207, 0.0
    %v230 = vadd.f32 %v228, %v229
    %v231 = vsel %vm217, %v208, 0.0
    %v232 = vadd.f32 %v230, %v231
    %v233 = vsel %vm217, %v209, 0.0
    %v234 = vadd.f32 %v232, %v233
    %v235 = vsel %vm217, %v210, 0.0
    %v236 = vadd.f32 %v234, %v235
    %v237 = vsel %vm217, %v211, 0.0
    %v238 = vadd.f32 %v236, %v237
    %v239 = vsel %vm217, %v212, 0.0
    %v240 = vadd.f32 %v238, %v239
    %v241 = vsel %vm217, %v213, 0.0
    %v242 = vadd.f32 %v240, %v241
    %v243 = vsel %vm217, %v214, 0.0
    %v244 = vadd.f32 %v242, %v243
    %v245 = vsel %vm217, %v215, 0.0
    %v246 = vadd.f32 %v244, %v245
    %v247 = vsel %vm217, %v216, 0.0
    %v248 = vadd.f32 %v246, %v247
    %v249 = vrot.slane %v248, 4
    %v250 = vadd.f32 %v248, %v249
    %v251 = vrot.slane %v250, 2
    %v252 = vadd.f32 %v250, %v251
    %v253 = vrot.slane %v252, 1
    %v254 = vadd.f32 %v252, %v253
    %v255 = vmul.f32 %v185, %v185
    %v256 = vmul.f32 %v186, %v186
    %v257 = vmul.f32 %v187, %v187
    %v258 = vmul.f32 %v188, %v188
    %v259 = vmul.f32 %v189, %v189
    %v260 = vmul.f32 %v190, %v190
    %v261 = vmul.f32 %v191, %v191
    %v262 = vmul.f32 %v192, %v192
    %v263 = vmul.f32 %v193, %v193
    %v264 = vmul.f32 %v194, %v194
    %v265 = vmul.f32 %v195, %v195
    %v266 = vmul.f32 %v196, %v196
    %v267 = vmul.f32 %v197, %v197
    %v268 = vmul.f32 %v198, %v198
    %v269 = vmul.f32 %v199, %v199
    %v270 = vmul.f32 %v200, %v200
    %v271 = vsel %vm217, %v255, 0.0
    %v272 = vsel %vm217, %v256, 0.0
    %v273 = vadd.f32 %v271, %v272
    %v274 = vsel %vm217, %v257, 0.0
    %v275 = vadd.f32 %v273, %v274
    %v276 = vsel %vm217, %v258, 0.0
    %v277 = vadd.f32 %v275, %v276
    %v278 = vsel %vm217, %v259, 0.0
    %v279 = vadd.f32 %v277, %v278
    %v280 = vsel %vm217, %v260, 0.0
    %v281 = vadd.f32 %v279, %v280
    %v282 = vsel %vm217, %v261, 0.0
    %v283 = vadd.f32 %v281, %v282
    %v284 = vsel %vm217, %v262, 0.0
    %v285 = vadd.f32 %v283, %v284
    %v286 = vsel %vm217, %v263, 0.0
    %v287 = vadd.f32 %v285, %v286
    %v288 = vsel %vm217, %v264, 0.0
    %v289 = vadd.f32 %v287, %v288
    %v290 = vsel %vm217, %v265, 0.0
    %v291 = vadd.f32 %v289, %v290
    %v292 = vsel %vm217, %v266, 0.0
    %v293 = vadd.f32 %v291, %v292
    %v294 = vsel %vm217, %v267, 0.0
    %v295 = vadd.f32 %v293, %v294
    %v296 = vsel %vm217, %v268, 0.0
    %v297 = vadd.f32 %v295, %v296
    %v298 = vsel %vm217, %v269, 0.0
    %v299 = vadd.f32 %v297, %v298
    %v300 = vsel %vm217, %v270, 0.0
    %v301 = vadd.f32 %v299, %v300
    %v302 = vrot.slane %v301, 4
    %v303 = vadd.f32 %v301, %v302
    %v304 = vrot.slane %v303, 2
    %v305 = vadd.f32 %v303, %v304
    %v306 = vrot.slane %v305, 1
    %v307 = vadd.f32 %v305, %v306
    %vm308 = vcmask 1040384
    %v309 = vsel %vm308, %v254, %v307
    %vm310 = vcmask 123904
    %311 = vst.msk [vmem:[#allocation5] sm:$0x3] %vm310, %v309
    // Predicated region
    $region10: #{tpu_custom_call.1} parent=1 // pred_check
      _
    $region11: #{tpu_custom_call.1} parent=1 // pred_check_branch
      %313 = sbr.rel (0) target = $region13
    $region12: #{tpu_custom_call.1} parent=1 // pred_region
      %s315 = ssub.s32 32, 32
      %316 = vsyncadd [#allocation4], %s315
      %s318 = sshll.u32 [#allocation5], 4
      %s319 = int_to_ptr.vmem [resolvable:$true] %s318
      %321 = dma.vmem_to_hbm [thread:$0]  %s319, 32, %s1, [#allocation4]
    $region13: #{tpu_custom_call.1} parent=1 // pred_fallthru
      _
    // Predicated region
    $region14: #{tpu_custom_call.1} parent=1 // pred_check
      _
    $region15: #{tpu_custom_call.1} parent=1 // pred_check_branch
      %323 = sbr.rel (0) target = $region17
    $region16: #{tpu_custom_call.1} parent=1 // pred_region
      %324 = dma.done [#allocation4], 32
    $region17: #{tpu_custom_call.1} parent=1 // pred_fallthru
      _
    %325 = vsyncpa [#allocation3], 1
    %326 = vsyncpa [#allocation4], 1

</llo_original>
